<compile_context>
chip_gen: v6e
topology: v6e:2x2x1
jax: 0.10.0
libtpu: 0.0.40
codegen_flags: <defaults>
</compile_context>

<pallas_src>
import jax
import jax.numpy as jnp
from jax.experimental import pallas as pl
from jax.experimental.pallas import tpu as pltpu


def _make_dagnet_kernel(n_layers):
    """Kernel over one lane (batch) tile, feature-major layout.

    Refs: xT [d, TN], w1 [d*m1, d], b1 [d*m1, 1],
          (wbdT_l [d*fout, d*fin], bT_l [d*fout, 1]) * n_layers,
          out [d, TN].
    """

    def kernel(*refs):
        xT_ref, w1_ref, b1_ref = refs[0], refs[1], refs[2]
        layer_refs = refs[3:3 + 2 * n_layers]
        o_ref = refs[3 + 2 * n_layers]
        mm_dtype = w1_ref.dtype  # matmul operand dtype (bf16 or f32)

        # a1: H = W1 @ X^T + b1 -> [d*m1, TN], lane-dense, f32 accumulation.
        h = jnp.dot(w1_ref[...], xT_ref[...],
                    preferred_element_type=jnp.float32) + b1_ref[...]

        # Fused per-node MLP: each L layer is one block-diagonal matmul.
        for li in range(n_layers):
            w_ref = layer_refs[2 * li]       # [d*fout, d*fin]
            b_ref = layer_refs[2 * li + 1]   # [d*fout, 1]
            # sigmoid(h) == 0.5*tanh(0.5*h)+0.5: one EUP op + one VPU FMA (f32).
            s = 0.5 * jnp.tanh(0.5 * h) + 0.5
            h = jnp.dot(w_ref[...], s.astype(mm_dtype),
                        preferred_element_type=jnp.float32) + b_ref[...]

        # Last layer has fout == 1 -> h is [d, TN] (this is the squeeze(dim=2)).
        o_ref[...] = h.astype(o_ref.dtype)

    return kernel


def _block_diag_T(w):
    """[d, fin, fout] -> block-diagonal [d*fout, d*fin], block j = w[j].T."""
    d, fin, fout = w.shape
    eye = jnp.eye(d, dtype=w.dtype)
    # out[j*fout+o, k*fin+i] = w[j, i, o] * delta_jk
    return jnp.einsum('jab,jk->jbka', w, eye).reshape(d * fout, d * fin)


def _round_up(n, m):
    return -(-n // m) * m


def dagnet_forward(x, w1, b1, layer_weights, layer_biases, dims, *,
                   tn=1024, compute_dtype=jnp.bfloat16):
    """Pallas implementation of DagNet.forward (non-linear path, dims[-1]==1).

    Node-major invariant: torch's h.view(-1, d, m1) puts node j, feature i at
    flat row j*m1 + i; W1's rows and the block-diagonal weights below use the
    same ordering, which is what makes the fused matmuls correct.
    """
    assert len(dims) > 2 and dims[-1] == 1
    n, d_in = x.shape
    d, m1 = dims[0], dims[1]
    assert d_in == d and w1.shape == (d * m1, d)

    # Lane-dense (feature-major) layout: batch lives on the lane axis.
    xT = jnp.asarray(x, jnp.float32).T.astype(compute_dtype)       # [d, N]
    w1_c = jnp.asarray(w1, jnp.float32).astype(compute_dtype)      # [d*m1, d]
    b1_c = jnp.asarray(b1, jnp.float32).reshape(d * m1, 1)         # f32

    # Block-diagonal (transposed) L-layer weights + column biases.
    layer_args, layer_specs = [], []
    l_flops_per_row, transc_per_row = 0, 0
    for w, b in zip(layer_weights, layer_biases):
        w = jnp.asarray(w, jnp.float32)
        b = jnp.asarray(b, jnp.float32)
        dd, fin, fout = w.shape
        assert dd == d
        wbdT = _block_diag_T(w).astype(compute_dtype)               # [d*fout, d*fin]
        bT = b.reshape(d * fout, 1)                                 # f32
        layer_args += [wbdT, bT]
        layer_specs += [
            pl.BlockSpec((d * fout, d * fin), lambda i: (0, 0)),    # resident
            pl.BlockSpec((d * fout, 1), lambda i: (0, 0)),          # resident
        ]
        l_flops_per_row += 2 * d * fin * fout
        transc_per_row += d * fin

    # Lane tiling: multiple of 128; cap at ~N/2 so there are >=2 tiles whenever
    # N allows (v7x megacore), default up to 1024 lanes per tile for large N.
    half = -(-n // 2)
    tn_eff = max(128, min(_round_up(tn, 128), _round_up(half, 128)))
    n_pad = _round_up(max(n, 1), tn_eff)
    if n_pad != n:
        # Padded batch columns flow through sigmoid(bias) garbage; values stay
        # bounded (no NaN/Inf) and are sliced off below -- never reduce over
        # the padded region.
        xT = jnp.pad(xT, ((0, 0), (0, n_pad - n)))
    grid = (n_pad // tn_eff,)

    cost = pl.CostEstimate(
        flops=int(n_pad * (2 * d * d * m1 + l_flops_per_row)),
        transcendentals=int(n_pad * transc_per_row),
        bytes_accessed=int(xT.size * xT.dtype.itemsize
                           + w1_c.size * w1_c.dtype.itemsize
                           + b1_c.size * 4
                           + sum(int(a.size) * a.dtype.itemsize for a in layer_args)
                           + n_pad * d * 4),
    )

    kernel = _make_dagnet_kernel(len(dims) - 2)

    outT = pl.pallas_call(
        kernel,
        out_shape=jax.ShapeDtypeStruct((d, n_pad), jnp.float32),
        grid=grid,
        in_specs=[
            pl.BlockSpec((d, tn_eff), lambda i: (0, i)),            # x^T lane tile
            pl.BlockSpec((d * m1, d), lambda i: (0, 0)),            # W1 (resident)
            pl.BlockSpec((d * m1, 1), lambda i: (0, 0)),            # b1 (resident)
            *layer_specs,                                           # block-diag layers
        ],
        out_specs=pl.BlockSpec((d, tn_eff), lambda i: (0, i)),      # lane-dense store
        compiler_params=pltpu.CompilerParams(
            dimension_semantics=("parallel",)),
        cost_estimate=cost,
    )(xT, w1_c, b1_c, *layer_args)

    # Back to batch-major [N, d].
    return outT.T[:n]


def dagnet_reference(x, w1, b1, layer_weights, layer_biases, dims):
    """Pure-JAX f32 reference mirroring the PyTorch module."""
    d, m1 = dims[0], dims[1]
    h = x @ w1.T + b1                                          # nn.Linear
    h = h.reshape(-1, d, m1)                                   # view(-1, d, m1)
    for w, b in zip(layer_weights, layer_biases):              # class A / L
        h = jax.nn.sigmoid(h)
        h = jnp.einsum('ndi,dio->ndo', h, w) + b[None]
    return h[..., 0]                                           # squeeze(dim=2)


def _uniform(key, shape, bound):
    return jax.random.uniform(key, shape, jnp.float32, minval=-bound, maxval=bound)


if __name__ == "__main__":
    # Small DAG-learning config: d=8 variables, hidden widths 16 -> 8 -> 1.
    dims = [8, 16, 8, 1]
    d, m1 = dims[0], dims[1]
    n = 300  # batch (non-multiple of the lane tile: exercises padding + 2 tiles)

    key = jax.random.PRNGKey(0)
    keys = jax.random.split(key, 8)

    # nn.Linear(d, d*m1): weight [d*m1, d], bias [d*m1], uniform(+-1/sqrt(d))
    b_lin = 1.0 / jnp.sqrt(jnp.float32(d))
    w1 = _uniform(keys[0], (d * m1, d), b_lin)
    b1 = _uniform(keys[1], (d * m1,), b_lin)

    # L(num_linear=d, in=dims[i+1], out=dims[i+2]), uniform(+-1/sqrt(in))
    layer_weights, layer_biases = [], []
    kidx = 2
    for i in range(len(dims) - 2):
        fin, fout = dims[i + 1], dims[i + 2]
        bnd = 1.0 / jnp.sqrt(jnp.float32(fin))
        layer_weights.append(_uniform(keys[kidx], (d, fin, fout), bnd)); kidx += 1
        layer_biases.append(_uniform(keys[kidx], (d, fout), bnd)); kidx += 1

    x = jax.random.normal(keys[kidx], (n, d), jnp.float32)

    ref = dagnet_reference(x, w1, b1, layer_weights, layer_biases, dims)

    # f32 operand path: tight check against the reference (structure/wiring).
    out_f32 = dagnet_forward(x, w1, b1, layer_weights, layer_biases, dims,
                             compute_dtype=jnp.float32)
    out_f32 = jax.block_until_ready(out_f32)
    assert out_f32.shape == (n, d)
    assert jnp.allclose(out_f32, ref, atol=1e-4, rtol=1e-4)

    # bf16 operand path (production default on v6e/v7x): looser tolerance for
    # bf16 matmul operand rounding (accumulation is still f32).
    out_bf16 = dagnet_forward(x, w1, b1, layer_weights, layer_biases, dims,
                              compute_dtype=jnp.bfloat16)
    out_bf16 = jax.block_until_ready(out_bf16)
    assert out_bf16.shape == (n, d)
    assert jnp.allclose(out_bf16, ref, atol=5e-2, rtol=5e-2)

    print("KERNEL_OK")
</pallas_src>

<mosaic_0001>
module attributes {stable_mosaic.version = 11 : i64} {
  func.func @kernel(%arg0: i32, %arg1: memref<8x256xf32, #tpu.memory_space<vmem>>, %arg2: memref<128x8xf32, #tpu.memory_space<vmem>>, %arg3: memref<128x1xf32, #tpu.memory_space<vmem>>, %arg4: memref<64x128xf32, #tpu.memory_space<vmem>>, %arg5: memref<64x1xf32, #tpu.memory_space<vmem>>, %arg6: memref<8x64xf32, #tpu.memory_space<vmem>>, %arg7: memref<8x1xf32, #tpu.memory_space<vmem>>, %arg8: memref<8x256xf32, #tpu.memory_space<vmem>>) attributes {dimension_semantics = [#tpu.dimension_semantics<parallel>], iteration_bounds = array<i64: 2>, scalar_prefetch = 0 : i64, scratch_operands = 0 : i64, tpu.core_type = #tpu.core_type<tc>, window_params = [{transform_indices = @transform_0, window_bounds = array<i64: 8, 256>}, {pipeline_mode = #tpu.pipeline_mode<synchronous>, transform_indices = @transform_1, window_bounds = array<i64: 128, 8>}, {pipeline_mode = #tpu.pipeline_mode<synchronous>, transform_indices = @transform_2, window_bounds = array<i64: 128, 1>}, {pipeline_mode = #tpu.pipeline_mode<synchronous>, transform_indices = @transform_3, window_bounds = array<i64: 64, 128>}, {pipeline_mode = #tpu.pipeline_mode<synchronous>, transform_indices = @transform_4, window_bounds = array<i64: 64, 1>}, {pipeline_mode = #tpu.pipeline_mode<synchronous>, transform_indices = @transform_5, window_bounds = array<i64: 8, 64>}, {pipeline_mode = #tpu.pipeline_mode<synchronous>, transform_indices = @transform_6, window_bounds = array<i64: 8, 1>}, {transform_indices = @transform_7, window_bounds = array<i64: 8, 256>}]} {
    %c0 = arith.constant 0 : index
    %c0_0 = arith.constant 0 : index
    %0 = vector.load %arg2[%c0, %c0_0] : memref<128x8xf32, #tpu.memory_space<vmem>>, vector<128x8xf32>
    %c0_1 = arith.constant 0 : index
    %c0_2 = arith.constant 0 : index
    %1 = vector.load %arg1[%c0_1, %c0_2] : memref<8x256xf32, #tpu.memory_space<vmem>>, vector<8x256xf32>
    %cst = arith.constant dense<0.000000e+00> : vector<128x256xf32>
    %2 = tpu.matmul %0, %1, %cst {dimension_numbers = #tpu.dot_dimension_numbers<[1], [0], [0], [1], [0, 0, 1, 1], [], []>} : vector<128x8xf32>, vector<8x256xf32>, vector<128x256xf32> -> vector<128x256xf32>
    %c0_3 = arith.constant 0 : index
    %c0_4 = arith.constant 0 : index
    %3 = vector.load %arg3[%c0_3, %c0_4] : memref<128x1xf32, #tpu.memory_space<vmem>>, vector<128x1xf32>
    %4 = vector.broadcast %3 : vector<128x1xf32> to vector<128x256xf32>
    %5 = arith.addf %2, %4 : vector<128x256xf32>
    %cst_5 = arith.constant 5.000000e-01 : f32
    %6 = vector.broadcast %cst_5 : f32 to vector<128x256xf32>
    %7 = arith.mulf %6, %5 : vector<128x256xf32>
    %8 = math.tanh %7 : vector<128x256xf32>
    %cst_6 = arith.constant 5.000000e-01 : f32
    %9 = vector.broadcast %cst_6 : f32 to vector<128x256xf32>
    %10 = arith.mulf %9, %8 : vector<128x256xf32>
    %cst_7 = arith.constant 5.000000e-01 : f32
    %11 = vector.broadcast %cst_7 : f32 to vector<128x256xf32>
    %12 = arith.addf %10, %11 : vector<128x256xf32>
    %c0_8 = arith.constant 0 : index
    %c0_9 = arith.constant 0 : index
    %13 = vector.load %arg4[%c0_8, %c0_9] : memref<64x128xf32, #tpu.memory_space<vmem>>, vector<64x128xf32>
    %cst_10 = arith.constant dense<0.000000e+00> : vector<64x256xf32>
    %14 = tpu.matmul %13, %12, %cst_10 {dimension_numbers = #tpu.dot_dimension_numbers<[1], [0], [0], [1], [0, 0, 1, 1], [], []>} : vector<64x128xf32>, vector<128x256xf32>, vector<64x256xf32> -> vector<64x256xf32>
    %c0_11 = arith.constant 0 : index
    %c0_12 = arith.constant 0 : index
    %15 = vector.load %arg5[%c0_11, %c0_12] : memref<64x1xf32, #tpu.memory_space<vmem>>, vector<64x1xf32>
    %16 = vector.broadcast %15 : vector<64x1xf32> to vector<64x256xf32>
    %17 = arith.addf %14, %16 : vector<64x256xf32>
    %cst_13 = arith.constant 5.000000e-01 : f32
    %18 = vector.broadcast %cst_13 : f32 to vector<64x256xf32>
    %19 = arith.mulf %18, %17 : vector<64x256xf32>
    %20 = math.tanh %19 : vector<64x256xf32>
    %cst_14 = arith.constant 5.000000e-01 : f32
    %21 = vector.broadcast %cst_14 : f32 to vector<64x256xf32>
    %22 = arith.mulf %21, %20 : vector<64x256xf32>
    %cst_15 = arith.constant 5.000000e-01 : f32
    %23 = vector.broadcast %cst_15 : f32 to vector<64x256xf32>
    %24 = arith.addf %22, %23 : vector<64x256xf32>
    %c0_16 = arith.constant 0 : index
    %c0_17 = arith.constant 0 : index
    %25 = vector.load %arg6[%c0_16, %c0_17] : memref<8x64xf32, #tpu.memory_space<vmem>>, vector<8x64xf32>
    %cst_18 = arith.constant dense<0.000000e+00> : vector<8x256xf32>
    %26 = tpu.matmul %25, %24, %cst_18 {dimension_numbers = #tpu.dot_dimension_numbers<[1], [0], [0], [1], [0, 0, 1, 1], [], []>} : vector<8x64xf32>, vector<64x256xf32>, vector<8x256xf32> -> vector<8x256xf32>
    %c0_19 = arith.constant 0 : index
    %c0_20 = arith.constant 0 : index
    %27 = vector.load %arg7[%c0_19, %c0_20] : memref<8x1xf32, #tpu.memory_space<vmem>>, vector<8x1xf32>
    %28 = vector.broadcast %27 : vector<8x1xf32> to vector<8x256xf32>
    %29 = arith.addf %26, %28 : vector<8x256xf32>
    %c0_21 = arith.constant 0 : index
    %c0_22 = arith.constant 0 : index
    %30 = vector.load %arg8[%c0_21, %c0_22] : memref<8x256xf32, #tpu.memory_space<vmem>>, vector<8x256xf32>
    tpu.vector_store %arg8[%c0_21, %c0_22], %29 {strides = array<i32>} : memref<8x256xf32, #tpu.memory_space<vmem>>, vector<8x256xf32>,
    return
  }
  func.func @transform_0(%arg0: i32) -> (i32, i32) {
    %c0_i32 = arith.constant 0 : i32
    %c0_i32_0 = arith.constant 0 : i32
    return %c0_i32, %arg0 : i32, i32
  }
  func.func @transform_1(%arg0: i32) -> (i32, i32) {
    %c0_i32 = arith.constant 0 : i32
    %c0_i32_0 = arith.constant 0 : i32
    %c0_i32_1 = arith.constant 0 : i32
    return %c0_i32, %c0_i32_0 : i32, i32
  }
  func.func @transform_2(%arg0: i32) -> (i32, i32) {
    %c0_i32 = arith.constant 0 : i32
    %c0_i32_0 = arith.constant 0 : i32
    %c0_i32_1 = arith.constant 0 : i32
    return %c0_i32, %c0_i32_0 : i32, i32
  }
  func.func @transform_3(%arg0: i32) -> (i32, i32) {
    %c0_i32 = arith.constant 0 : i32
    %c0_i32_0 = arith.constant 0 : i32
    %c0_i32_1 = arith.constant 0 : i32
    return %c0_i32, %c0_i32_0 : i32, i32
  }
  func.func @transform_4(%arg0: i32) -> (i32, i32) {
    %c0_i32 = arith.constant 0 : i32
    %c0_i32_0 = arith.constant 0 : i32
    %c0_i32_1 = arith.constant 0 : i32
    return %c0_i32, %c0_i32_0 : i32, i32
  }
  func.func @transform_5(%arg0: i32) -> (i32, i32) {
    %c0_i32 = arith.constant 0 : i32
    %c0_i32_0 = arith.constant 0 : i32
    %c0_i32_1 = arith.constant 0 : i32
    return %c0_i32, %c0_i32_0 : i32, i32
  }
  func.func @transform_6(%arg0: i32) -> (i32, i32) {
    %c0_i32 = arith.constant 0 : i32
    %c0_i32_0 = arith.constant 0 : i32
    %c0_i32_1 = arith.constant 0 : i32
    return %c0_i32, %c0_i32_0 : i32, i32
  }
  func.func @transform_7(%arg0: i32) -> (i32, i32) {
    %c0_i32 = arith.constant 0 : i32
    %c0_i32_0 = arith.constant 0 : i32
    return %c0_i32, %arg0 : i32, i32
  }
}

</mosaic_0001>

<llo_original>
// kernel: tpu_custom_call.1
$region0: #{tpu_custom_call.1}
  #allocation0 [shape = 'u32[]', space=smem, size = 0x4, offset = 0x4, fixed_abs, tag = 'smem constant byte address 0x4 - core index']
  #allocation1 [shape = 'u32[144,128]{1,0:T(1,128)}', space=vmem, size = 0x12000, scoped, tag = 'internal scratch']
  %s0 = inlined_call_operand.vmem [shape: f32[8,512], index: 0, kind: input, shape index: {}]
  %s1 = inlined_call_operand.vmem [shape: f32[128,8], index: 1, kind: input, shape index: {}]
  %s2 = inlined_call_operand.vmem [shape: f32[128,1], index: 2, kind: input, shape index: {}]
  %s3 = inlined_call_operand.vmem [shape: f32[64,128], index: 3, kind: input, shape index: {}]
  %s4 = inlined_call_operand.vmem [shape: f32[64,1], index: 4, kind: input, shape index: {}]
  %s5 = inlined_call_operand.vmem [shape: f32[8,64], index: 5, kind: input, shape index: {}]
  %s6 = inlined_call_operand.vmem [shape: f32[8,1], index: 6, kind: input, shape index: {}]
  %s7 = inlined_call_operand.hbm [shape: f32[8,512], index: 7, kind: output, shape index: {}]
  %s8 = sld [smem:[#allocation0]]
  $region61: #{tpu_custom_call.1} parent=0
    _
  %s10 = ssub.s32 1, %s8
  %s11 = scalar_select 0, %s10, %s8
  $region1: #{tpu_custom_call.1} parent=0
    #allocation2 [shape = 'u8[16384]{0}', space=vmem, size = 0x4000, scoped, tag = 'output window, operand 0']
    #allocation3 [shape = 's32[2]{0}', space=sflag, size = 0x8, scoped, tag = 'scoped memory for tpu_custom_call.1']
    %12 = vsyncpa [#allocation3], 0
    %s13 = scalar_lea.sflag [#allocation3], 1
    %14 = vsyncpa %s13, 0
    loop: start=0, step=1, limit=4
    $region2: #{tpu_custom_call.1} parent=1 // loop_pre_header
      _
    $region3: #{tpu_custom_call.1} parent=1 // loop_header
      %s16 = sphi 0, %s20
      %p17 = scmp.ge.s32.totalorder %s16, 4
      %s26 = sphi 0, %s28
      %s29 = sphi 0, %s26
      %s30 = sphi 0, %s29
      %s46 = sphi 0, %s30
      %s50 = sphi 0, %s50
      %s52 = sphi 0, %s50
      %s53 = sphi 0, %s52
      %s67 = sphi 0, %s53
      %s71 = sphi 0, %s71
      %s73 = sphi 0, %s71
      %s74 = sphi 0, %s73
      %s88 = sphi 0, %s74
      %s92 = sphi 0, %s92
      %s94 = sphi 0, %s92
      %s95 = sphi 0, %s94
      %s109 = sphi 0, %s95
      %s113 = sphi 0, %s113
      %s115 = sphi 0, %s113
      %s116 = sphi 0, %s115
      %s130 = sphi 0, %s116
      %s134 = sphi 0, %s134
      %s136 = sphi 0, %s134
      %s137 = sphi 0, %s136
      %s151 = sphi 0, %s137
      %s155 = sphi 0, %s155
      %s157 = sphi 0, %s155
      %s158 = sphi 0, %s157
      %s172 = sphi 0, %s158
      %s178 = sphi 0, %s180
      %s181 = sphi 0, %s178
      %s182 = sphi 0, %s181
      %s198 = sphi 0, %s182
    $region4: #{tpu_custom_call.1} parent=1 // loop_header_branch
      %19 = sbr.rel (%p17) target = $region8
    $region5: #{tpu_custom_call.1} parent=1 // loop_body
      %s21 = ssub.s32 %s16, 1
      %s22 = ssub.s32 %s16, 2
      %s23 = sadd.s32 %s16, 1
      %s24 = ssub.s32 %s16, %s23
      %p25 = scmp.eq.s32.totalorder %s24, 0
      %s27 = sadd.s32 %s26, 1
      %s28 = scalar_select %p25, %s26, %s27
      %p31 = pneg %p25
      %p32 = scmp.eq.s32.totalorder %s16, 1
      %p33 = por %p31, %p32
      %p34 = scmp.ne.s32.totalorder %s26, %s29
      %p35 = scmp.eq.s32.totalorder %s16, 0
      %p36 = por %p34, %p35
      %p37 = scmp.ne.s32.totalorder %s26, %s29
      %p38 = scmp.eq.s32.totalorder %s21, 1
      %p39 = por %p37, %p38
      %p40 = scmp.ne.s32.totalorder %s29, %s30
      %p41 = scmp.eq.s32.totalorder %s21, 0
      %p42 = por %p40, %p41
      %p43 = scmp.ne.s32.totalorder %s29, %s30
      %p44 = scmp.eq.s32.totalorder %s22, 1
      %p45 = por %p43, %p44
      %p47 = scmp.ne.s32.totalorder %s30, %s46
      %p48 = scmp.eq.s32.totalorder %s22, 0
      %p49 = por %p47, %p48
      %s51 = sadd.s32 %s50, 1
      %p54 = scmp.eq.s32.totalorder %s16, 1
      %p55 = scmp.ne.s32.totalorder %s50, %s52
      %p56 = scmp.eq.s32.totalorder %s16, 0
      %p57 = por %p55, %p56
      %p58 = scmp.ne.s32.totalorder %s50, %s52
      %p59 = scmp.eq.s32.totalorder %s21, 1
      %p60 = por %p58, %p59
      %p61 = scmp.ne.s32.totalorder %s52, %s53
      %p62 = scmp.eq.s32.totalorder %s21, 0
      %p63 = por %p61, %p62
      %p64 = scmp.ne.s32.totalorder %s52, %s53
      %p65 = scmp.eq.s32.totalorder %s22, 1
      %p66 = por %p64, %p65
      %p68 = scmp.ne.s32.totalorder %s53, %s67
      %p69 = scmp.eq.s32.totalorder %s22, 0
      %p70 = por %p68, %p69
      %s72 = sadd.s32 %s71, 1
      %p75 = scmp.eq.s32.totalorder %s16, 1
      %p76 = scmp.ne.s32.totalorder %s71, %s73
      %p77 = scmp.eq.s32.totalorder %s16, 0
      %p78 = por %p76, %p77
      %p79 = scmp.ne.s32.totalorder %s71, %s73
      %p80 = scmp.eq.s32.totalorder %s21, 1
      %p81 = por %p79, %p80
      %p82 = scmp.ne.s32.totalorder %s73, %s74
      %p83 = scmp.eq.s32.totalorder %s21, 0
      %p84 = por %p82, %p83
      %p85 = scmp.ne.s32.totalorder %s73, %s74
      %p86 = scmp.eq.s32.totalorder %s22, 1
      %p87 = por %p85, %p86
      %p89 = scmp.ne.s32.totalorder %s74, %s88
      %p90 = scmp.eq.s32.totalorder %s22, 0
      %p91 = por %p89, %p90
      %s93 = sadd.s32 %s92, 1
      %p96 = scmp.eq.s32.totalorder %s16, 1
      %p97 = scmp.ne.s32.totalorder %s92, %s94
      %p98 = scmp.eq.s32.totalorder %s16, 0
      %p99 = por %p97, %p98
      %p100 = scmp.ne.s32.totalorder %s92, %s94
      %p101 = scmp.eq.s32.totalorder %s21, 1
      %p102 = por %p100, %p101
      %p103 = scmp.ne.s32.totalorder %s94, %s95
      %p104 = scmp.eq.s32.totalorder %s21, 0
      %p105 = por %p103, %p104
      %p106 = scmp.ne.s32.totalorder %s94, %s95
      %p107 = scmp.eq.s32.totalorder %s22, 1
      %p108 = por %p106, %p107
      %p110 = scmp.ne.s32.totalorder %s95, %s109
      %p111 = scmp.eq.s32.totalorder %s22, 0
      %p112 = por %p110, %p111
      %s114 = sadd.s32 %s113, 1
      %p117 = scmp.eq.s32.totalorder %s16, 1
      %p118 = scmp.ne.s32.totalorder %s113, %s115
      %p119 = scmp.eq.s32.totalorder %s16, 0
      %p120 = por %p118, %p119
      %p121 = scmp.ne.s32.totalorder %s113, %s115
      %p122 = scmp.eq.s32.totalorder %s21, 1
      %p123 = por %p121, %p122
      %p124 = scmp.ne.s32.totalorder %s115, %s116
      %p125 = scmp.eq.s32.totalorder %s21, 0
      %p126 = por %p124, %p125
      %p127 = scmp.ne.s32.totalorder %s115, %s116
      %p128 = scmp.eq.s32.totalorder %s22, 1
      %p129 = por %p127, %p128
      %p131 = scmp.ne.s32.totalorder %s116, %s130
      %p132 = scmp.eq.s32.totalorder %s22, 0
      %p133 = por %p131, %p132
      %s135 = sadd.s32 %s134, 1
      %p138 = scmp.eq.s32.totalorder %s16, 1
      %p139 = scmp.ne.s32.totalorder %s134, %s136
      %p140 = scmp.eq.s32.totalorder %s16, 0
      %p141 = por %p139, %p140
      %p142 = scmp.ne.s32.totalorder %s134, %s136
      %p143 = scmp.eq.s32.totalorder %s21, 1
      %p144 = por %p142, %p143
      %p145 = scmp.ne.s32.totalorder %s136, %s137
      %p146 = scmp.eq.s32.totalorder %s21, 0
      %p147 = por %p145, %p146
      %p148 = scmp.ne.s32.totalorder %s136, %s137
      %p149 = scmp.eq.s32.totalorder %s22, 1
      %p150 = por %p148, %p149
      %p152 = scmp.ne.s32.totalorder %s137, %s151
      %p153 = scmp.eq.s32.totalorder %s22, 0
      %p154 = por %p152, %p153
      %s156 = sadd.s32 %s155, 1
      %p159 = scmp.eq.s32.totalorder %s16, 1
      %p160 = scmp.ne.s32.totalorder %s155, %s157
      %p161 = scmp.eq.s32.totalorder %s16, 0
      %p162 = por %p160, %p161
      %p163 = scmp.ne.s32.totalorder %s155, %s157
      %p164 = scmp.eq.s32.totalorder %s21, 1
      %p165 = por %p163, %p164
      %p166 = scmp.ne.s32.totalorder %s157, %s158
      %p167 = scmp.eq.s32.totalorder %s21, 0
      %p168 = por %p166, %p167
      %p169 = scmp.ne.s32.totalorder %s157, %s158
      %p170 = scmp.eq.s32.totalorder %s22, 1
      %p171 = por %p169, %p170
      %p173 = scmp.ne.s32.totalorder %s158, %s172
      %p174 = scmp.eq.s32.totalorder %s22, 0
      %p175 = por %p173, %p174
      %s176 = ssub.s32 %s16, %s23
      %p177 = scmp.eq.s32.totalorder %s176, 0
      %s179 = sadd.s32 %s178, 1
      %s180 = scalar_select %p177, %s178, %s179
      %p183 = pneg %p177
      %p184 = scmp.eq.s32.totalorder %s16, 1
      %p185 = por %p183, %p184
      %p186 = scmp.ne.s32.totalorder %s178, %s181
      %p187 = scmp.eq.s32.totalorder %s16, 0
      %p188 = por %p186, %p187
      %p189 = scmp.ne.s32.totalorder %s178, %s181
      %p190 = scmp.eq.s32.totalorder %s21, 1
      %p191 = por %p189, %p190
      %p192 = scmp.ne.s32.totalorder %s181, %s182
      %p193 = scmp.eq.s32.totalorder %s21, 0
      %p194 = por %p192, %p193
      %p195 = scmp.ne.s32.totalorder %s181, %s182
      %p196 = scmp.eq.s32.totalorder %s22, 1
      %p197 = por %p195, %p196
      %p199 = scmp.ne.s32.totalorder %s182, %s198
      %p200 = scmp.eq.s32.totalorder %s22, 0
      %p201 = por %p199, %p200
      %p202 = scmp.le.s32.totalorder 1, %s16
      %p203 = scmp.lt.s32.totalorder %s16, 3
      %p204 = pnand %p202, %p203
      %p205 = pneg %p204
      // Predicated region
      $region9: #{tpu_custom_call.1} parent=5 // pred_check
        _
      $region10: #{tpu_custom_call.1} parent=5 // pred_check_branch
        %207 = sbr.rel (%p204) target = $region12
      $region11: #{tpu_custom_call.1} parent=5 // pred_region
        %s208 = ssub.s32 %s16, 1
        // Predicated region
        $region13: #{tpu_custom_call.1} parent=11 // pred_check
          %p209 = pneg %p63
        $region14: #{tpu_custom_call.1} parent=11 // pred_check_branch
          %211 = sbr.rel (%p209) target = $region16
        $region15: #{tpu_custom_call.1} parent=11 // pred_region
          _
        $region16: #{tpu_custom_call.1} parent=11 // pred_fallthru
          _
        // Predicated region
        $region17: #{tpu_custom_call.1} parent=11 // pred_check
          %p212 = pneg %p84
        $region18: #{tpu_custom_call.1} parent=11 // pred_check_branch
          %214 = sbr.rel (%p212) target = $region20
        $region19: #{tpu_custom_call.1} parent=11 // pred_region
          _
        $region20: #{tpu_custom_call.1} parent=11 // pred_fallthru
          _
        // Predicated region
        $region21: #{tpu_custom_call.1} parent=11 // pred_check
          %p215 = pneg %p105
        $region22: #{tpu_custom_call.1} parent=11 // pred_check_branch
          %217 = sbr.rel (%p215) target = $region24
        $region23: #{tpu_custom_call.1} parent=11 // pred_region
          _
        $region24: #{tpu_custom_call.1} parent=11 // pred_fallthru
          _
        // Predicated region
        $region25: #{tpu_custom_call.1} parent=11 // pred_check
          %p218 = pneg %p126
        $region26: #{tpu_custom_call.1} parent=11 // pred_check_branch
          %220 = sbr.rel (%p218) target = $region28
        $region27: #{tpu_custom_call.1} parent=11 // pred_region
          _
        $region28: #{tpu_custom_call.1} parent=11 // pred_fallthru
          _
        // Predicated region
        $region29: #{tpu_custom_call.1} parent=11 // pred_check
          %p221 = pneg %p147
        $region30: #{tpu_custom_call.1} parent=11 // pred_check_branch
          %223 = sbr.rel (%p221) target = $region32
        $region31: #{tpu_custom_call.1} parent=11 // pred_region
          _
        $region32: #{tpu_custom_call.1} parent=11 // pred_fallthru
          _
        // Predicated region
        $region33: #{tpu_custom_call.1} parent=11 // pred_check
          %p224 = pneg %p168
        $region34: #{tpu_custom_call.1} parent=11 // pred_check_branch
          %226 = sbr.rel (%p224) target = $region36
        $region35: #{tpu_custom_call.1} parent=11 // pred_region
          _
        $region36: #{tpu_custom_call.1} parent=11 // pred_fallthru
          _
      $region12: #{tpu_custom_call.1} parent=5 // pred_fallthru
        _
      %p227 = scmp.lt.s32.totalorder %s16, 2
      // Predicated region
      $region37: #{tpu_custom_call.1} parent=5 // pred_check
        %p228 = pneg %p227
      $region38: #{tpu_custom_call.1} parent=5 // pred_check_branch
        %230 = sbr.rel (%p228) target = $region40
      $region39: #{tpu_custom_call.1} parent=5 // pred_region
        // Predicated region
        $region41: #{tpu_custom_call.1} parent=39 // pred_check
          %p231 = pneg %p36
        $region42: #{tpu_custom_call.1} parent=39 // pred_check_branch
          %233 = sbr.rel (%p231) target = $region44
        $region43: #{tpu_custom_call.1} parent=39 // pred_region
          %s234 = smul.u32 2, %s16
          %p235 = scmp.lt.s32.totalorder %s234, 3
          %s236 = scalar_select %p235, %s234, 3
          %s237 = smul.addr %s236, 8
          %s238 = scalar_lea.vmem %s0, %s237
          %s239 = smul.u32 2, %s16
        $region44: #{tpu_custom_call.1} parent=39 // pred_fallthru
          _
      $region40: #{tpu_custom_call.1} parent=5 // pred_fallthru
        _
      %p240 = scmp.le.s32.totalorder 1, %s16
      %p241 = scmp.lt.s32.totalorder %s16, 3
      %p242 = pnand %p240, %p241
      %p243 = pneg %p242
      // Predicated region
      $region45: #{tpu_custom_call.1} parent=5 // pred_check
        _
      $region46: #{tpu_custom_call.1} parent=5 // pred_check_branch
        %245 = sbr.rel (%p242) target = $region48
      $region47: #{tpu_custom_call.1} parent=5 // pred_region
        %s246 = ssub.s32 %s16, 1
        %s247 = smul.u32 2, %s21
        %p248 = scmp.lt.s32.totalorder %s247, 3
        %s249 = scalar_select %p248, %s247, 3
        %s250 = smul.addr %s249, 8
        %s251 = scalar_lea.vmem %s0, %s250
        %p252 = pneg %p42
        %p253 = pneg %p39
        %p254 = pneg %p63
        %p255 = pneg %p60
        %p256 = pneg %p84
        %p257 = pneg %p81
        %p258 = pneg %p105
        %p259 = pneg %p102
        %p260 = pneg %p126
        %p261 = pneg %p123
        %p262 = pneg %p147
        %p263 = pneg %p144
        %p264 = pneg %p168
        %p265 = pneg %p165
        %p266 = pneg %p194
        %p267 = pneg %p191
        %s268 = sand.u32 %s181, 1
        %s269 = scalar_lea.sflag [#allocation3], %s268
        %s270 = sand.u32 %s181, 1
        %s271 = smul.addr %s270, 16
        %s272 = scalar_lea.vmem [#allocation2], %s271
        %s273 = smul.u32 2, %s21
        %p274 = scmp.lt.s32.totalorder %s273, 3
        %s275 = scalar_select %p274, %s273, 3
        %s276 = smul.addr %s275, 8
        %s277 = scalar_lea.vmem %s0, %s276
        %s278 = smul.u32 2, %s21
        %s279 = smul.u32 2, %s21
        %v280 = vld [vmem:[%s1] sm:$0xff]
        %v281 = vld [vmem:[%s1 + $0x8] sm:$0xff]
        %v282 = vld [vmem:[%s1 + $0x10] sm:$0xff]
        %v283 = vld [vmem:[%s1 + $0x18] sm:$0xff]
        %v284 = vld [vmem:[%s1 + $0x20] sm:$0xff]
        %v285 = vld [vmem:[%s1 + $0x28] sm:$0xff]
        %v286 = vld [vmem:[%s1 + $0x30] sm:$0xff]
        %v287 = vld [vmem:[%s1 + $0x38] sm:$0xff]
        %v288 = vld [vmem:[%s1 + $0x40] sm:$0xff]
        %v289 = vld [vmem:[%s1 + $0x48] sm:$0xff]
        %v290 = vld [vmem:[%s1 + $0x50] sm:$0xff]
        %v291 = vld [vmem:[%s1 + $0x58] sm:$0xff]
        %v292 = vld [vmem:[%s1 + $0x60] sm:$0xff]
        %v293 = vld [vmem:[%s1 + $0x68] sm:$0xff]
        %v294 = vld [vmem:[%s1 + $0x70] sm:$0xff]
        %v295 = vld [vmem:[%s1 + $0x78] sm:$0xff]
        %v296 = vld [vmem:[%s277] sm:$0xff]
        %v297 = vld [vmem:[%s277 + $0x8] sm:$0xff]
        %v298 = vld [vmem:[%s2] sm:$0xff]
        %v299 = vld [vmem:[%s2 + $0x8] sm:$0xff]
        %v300 = vld [vmem:[%s2 + $0x10] sm:$0xff]
        %v301 = vld [vmem:[%s2 + $0x18] sm:$0xff]
        %v302 = vld [vmem:[%s2 + $0x20] sm:$0xff]
        %v303 = vld [vmem:[%s2 + $0x28] sm:$0xff]
        %v304 = vld [vmem:[%s2 + $0x30] sm:$0xff]
        %v305 = vld [vmem:[%s2 + $0x38] sm:$0xff]
        %v306 = vld [vmem:[%s2 + $0x40] sm:$0xff]
        %v307 = vld [vmem:[%s2 + $0x48] sm:$0xff]
        %v308 = vld [vmem:[%s2 + $0x50] sm:$0xff]
        %v309 = vld [vmem:[%s2 + $0x58] sm:$0xff]
        %v310 = vld [vmem:[%s2 + $0x60] sm:$0xff]
        %v311 = vld [vmem:[%s2 + $0x68] sm:$0xff]
        %v312 = vld [vmem:[%s2 + $0x70] sm:$0xff]
        %v313 = vld [vmem:[%s2 + $0x78] sm:$0xff]
        %315 = vset.pattern.permute.xlu0 0
        %316 = vperm.xlu0 %315, %v298
        %v317 = vpop.permute.xlu0 %316
        %320 = vset.pattern.permute.xlu0 0
        %321 = vperm.xlu0 %320, %v299
        %v322 = vpop.permute.xlu0 %321
        %325 = vset.pattern.permute.xlu0 0
        %326 = vperm.xlu0 %325, %v300
        %v327 = vpop.permute.xlu0 %326
        %330 = vset.pattern.permute.xlu0 0
        %331 = vperm.xlu0 %330, %v301
        %v332 = vpop.permute.xlu0 %331
        %335 = vset.pattern.permute.xlu0 0
        %336 = vperm.xlu0 %335, %v302
        %v337 = vpop.permute.xlu0 %336
        %340 = vset.pattern.permute.xlu0 0
        %341 = vperm.xlu0 %340, %v303
        %v342 = vpop.permute.xlu0 %341
        %345 = vset.pattern.permute.xlu0 0
        %346 = vperm.xlu0 %345, %v304
        %v347 = vpop.permute.xlu0 %346
        %350 = vset.pattern.permute.xlu0 0
        %351 = vperm.xlu0 %350, %v305
        %v352 = vpop.permute.xlu0 %351
        %355 = vset.pattern.permute.xlu0 0
        %356 = vperm.xlu0 %355, %v306
        %v357 = vpop.permute.xlu0 %356
        %360 = vset.pattern.permute.xlu0 0
        %361 = vperm.xlu0 %360, %v307
        %v362 = vpop.permute.xlu0 %361
        %365 = vset.pattern.permute.xlu0 0
        %366 = vperm.xlu0 %365, %v308
        %v367 = vpop.permute.xlu0 %366
        %370 = vset.pattern.permute.xlu0 0
        %371 = vperm.xlu0 %370, %v309
        %v372 = vpop.permute.xlu0 %371
        %375 = vset.pattern.permute.xlu0 0
        %376 = vperm.xlu0 %375, %v310
        %v377 = vpop.permute.xlu0 %376
        %380 = vset.pattern.permute.xlu0 0
        %381 = vperm.xlu0 %380, %v311
        %v382 = vpop.permute.xlu0 %381
        %385 = vset.pattern.permute.xlu0 0
        %386 = vperm.xlu0 %385, %v312
        %v387 = vpop.permute.xlu0 %386
        %390 = vset.pattern.permute.xlu0 0
        %391 = vperm.xlu0 %390, %v313
        %v392 = vpop.permute.xlu0 %391
        %vm394 = vcmask 64512
        %v396 = vsel %vm394, %v280, 0
        %v399 = vsel %vm394, %v281, 0
        %v402 = vsel %vm394, %v282, 0
        %v405 = vsel %vm394, %v283, 0
        %v408 = vsel %vm394, %v284, 0
        %v411 = vsel %vm394, %v285, 0
        %v414 = vsel %vm394, %v286, 0
        %v417 = vsel %vm394, %v287, 0
        %v420 = vsel %vm394, %v288, 0
        %v423 = vsel %vm394, %v289, 0
        %v426 = vsel %vm394, %v290, 0
        %v429 = vsel %vm394, %v291, 0
        %v432 = vsel %vm394, %v292, 0
        %v435 = vsel %vm394, %v293, 0
        %v438 = vsel %vm394, %v294, 0
        %v441 = vsel %vm394, %v295, 0
        %443 = vmatprep.subr.mxu0 0.0
        %444 = vmatpush1.msra.mxu0 0.0
        %445 = vmatprep.subr.mxu0 0.0
        %446 = vmatpush1.msra.mxu0 0.0
        %447 = vmatprep.subr.mxu0 0.0
        %448 = vmatpush1.msra.mxu0 0.0
        %449 = vmatprep.subr.mxu0 0.0
        %450 = vmatpush1.msra.mxu0 0.0
        %451 = vmatprep.subr.mxu0 0.0
        %452 = vmatpush1.msra.mxu0 0.0
        %453 = vmatprep.subr.mxu0 0.0
        %454 = vmatpush1.msra.mxu0 0.0
        %455 = vmatprep.subr.mxu0 0.0
        %456 = vmatpush1.msra.mxu0 0.0
        %457 = vmatprep.subr.mxu0 0.0
        %458 = vmatpush1.msra.mxu0 0.0
        %459 = vmatprep.subr.mxu0 0.0
        %460 = vmatpush1.msra.mxu0 0.0
        %461 = vmatprep.subr.mxu0 0.0
        %462 = vmatpush1.msra.mxu0 0.0
        %463 = vmatprep.subr.mxu0 0.0
        %464 = vmatpush1.msra.mxu0 0.0
        %465 = vmatprep.subr.mxu0 0.0
        %466 = vmatpush1.msra.mxu0 0.0
        %467 = vmatprep.subr.mxu0 0.0
        %468 = vmatpush1.msra.mxu0 0.0
        %469 = vmatprep.subr.mxu0 0.0
        %470 = vmatpush1.msra.mxu0 0.0
        %471 = vmatprep.subr.mxu0 0.0
        %472 = vmatpush1.msra.mxu0 0.0
        %473 = vmatprep.subr.mxu0 %v297
        %474 = vmatpush1.msra.mxu0 %v296
        %475 = vmatprep.subr.mxu0 0.0
        %476 = vmatpush2.msra.mxu0 0.0
        %477 = vmatprep.subr.mxu0 0.0
        %478 = vmatpush2.msra.mxu0 0.0
        %479 = vmatprep.subr.mxu0 0.0
        %480 = vmatpush2.msra.mxu0 0.0
        %481 = vmatprep.subr.mxu0 0.0
        %482 = vmatpush2.msra.mxu0 0.0
        %483 = vmatprep.subr.mxu0 0.0
        %484 = vmatpush2.msra.mxu0 0.0
        %485 = vmatprep.subr.mxu0 0.0
        %486 = vmatpush2.msra.mxu0 0.0
        %487 = vmatprep.subr.mxu0 0.0
        %488 = vmatpush2.msra.mxu0 0.0
        %489 = vmatprep.subr.mxu0 0.0
        %490 = vmatpush2.msra.mxu0 0.0
        %491 = vmatprep.subr.mxu0 0.0
        %492 = vmatpush2.msra.mxu0 0.0
        %493 = vmatprep.subr.mxu0 0.0
        %494 = vmatpush2.msra.mxu0 0.0
        %495 = vmatprep.subr.mxu0 0.0
        %496 = vmatpush2.msra.mxu0 0.0
        %497 = vmatprep.subr.mxu0 0.0
        %498 = vmatpush2.msra.mxu0 0.0
        %499 = vmatprep.subr.mxu0 0.0
        %500 = vmatpush2.msra.mxu0 0.0
        %501 = vmatprep.subr.mxu0 0.0
        %502 = vmatpush2.msra.mxu0 0.0
        %503 = vmatprep.subr.mxu0 0.0
        %504 = vmatpush2.msra.mxu0 0.0
        %505 = vmatprep.subr.mxu0 0.0
        %506 = vmatpush2.msra.mxu0 0.0
        %507 = vmatprep.mubr.f32.mxu0 0.0
        %508 = vmatmul.mubr.f32.gmra.mxu0 %v396
        %v509 = vpop.f32.mrf.mxu0
        %v510 = vadd.f32 %v317, %v509
        %v511 = vpop.f32.mrf.mxu0
        %v512 = vadd.f32 %v317, %v511
        %513 = vmatprep.mubr.f32.mxu0 0.0
        %514 = vmatmul.mubr.f32.gmra.mxu0 %v399
        %v515 = vpop.f32.mrf.mxu0
        %v516 = vadd.f32 %v322, %v515
        %v517 = vpop.f32.mrf.mxu0
        %v518 = vadd.f32 %v322, %v517
        %519 = vmatprep.mubr.f32.mxu0 0.0
        %520 = vmatmul.mubr.f32.gmra.mxu0 %v402
        %v521 = vpop.f32.mrf.mxu0
        %v522 = vadd.f32 %v327, %v521
        %v523 = vpop.f32.mrf.mxu0
        %v524 = vadd.f32 %v327, %v523
        %525 = vmatprep.mubr.f32.mxu0 0.0
        %526 = vmatmul.mubr.f32.gmra.mxu0 %v405
        %v527 = vpop.f32.mrf.mxu0
        %v528 = vadd.f32 %v332, %v527
        %v529 = vpop.f32.mrf.mxu0
        %v530 = vadd.f32 %v332, %v529
        %531 = vmatprep.mubr.f32.mxu0 0.0
        %532 = vmatmul.mubr.f32.gmra.mxu0 %v408
        %v533 = vpop.f32.mrf.mxu0
        %v534 = vadd.f32 %v337, %v533
        %v535 = vpop.f32.mrf.mxu0
        %v536 = vadd.f32 %v337, %v535
        %537 = vmatprep.mubr.f32.mxu0 0.0
        %538 = vmatmul.mubr.f32.gmra.mxu0 %v411
        %v539 = vpop.f32.mrf.mxu0
        %v540 = vadd.f32 %v342, %v539
        %v541 = vpop.f32.mrf.mxu0
        %v542 = vadd.f32 %v342, %v541
        %543 = vmatprep.mubr.f32.mxu0 0.0
        %544 = vmatmul.mubr.f32.gmra.mxu0 %v414
        %v545 = vpop.f32.mrf.mxu0
        %v546 = vadd.f32 %v347, %v545
        %v547 = vpop.f32.mrf.mxu0
        %v548 = vadd.f32 %v347, %v547
        %549 = vmatprep.mubr.f32.mxu0 0.0
        %550 = vmatmul.mubr.f32.gmra.mxu0 %v417
        %v551 = vpop.f32.mrf.mxu0
        %v552 = vadd.f32 %v352, %v551
        %v553 = vpop.f32.mrf.mxu0
        %v554 = vadd.f32 %v352, %v553
        %555 = vmatprep.mubr.f32.mxu0 0.0
        %556 = vmatmul.mubr.f32.gmra.mxu0 %v420
        %v557 = vpop.f32.mrf.mxu0
        %v558 = vadd.f32 %v357, %v557
        %v559 = vpop.f32.mrf.mxu0
        %v560 = vadd.f32 %v357, %v559
        %561 = vmatprep.mubr.f32.mxu0 0.0
        %562 = vmatmul.mubr.f32.gmra.mxu0 %v423
        %v563 = vpop.f32.mrf.mxu0
        %v564 = vadd.f32 %v362, %v563
        %v565 = vpop.f32.mrf.mxu0
        %v566 = vadd.f32 %v362, %v565
        %567 = vmatprep.mubr.f32.mxu0 0.0
        %568 = vmatmul.mubr.f32.gmra.mxu0 %v426
        %v569 = vpop.f32.mrf.mxu0
        %v570 = vadd.f32 %v367, %v569
        %v571 = vpop.f32.mrf.mxu0
        %v572 = vadd.f32 %v367, %v571
        %573 = vmatprep.mubr.f32.mxu0 0.0
        %574 = vmatmul.mubr.f32.gmra.mxu0 %v429
        %v575 = vpop.f32.mrf.mxu0
        %v576 = vadd.f32 %v372, %v575
        %v577 = vpop.f32.mrf.mxu0
        %v578 = vadd.f32 %v372, %v577
        %579 = vmatprep.mubr.f32.mxu0 0.0
        %580 = vmatmul.mubr.f32.gmra.mxu0 %v432
        %v581 = vpop.f32.mrf.mxu0
        %v582 = vadd.f32 %v377, %v581
        %v583 = vpop.f32.mrf.mxu0
        %v584 = vadd.f32 %v377, %v583
        %585 = vmatprep.mubr.f32.mxu0 0.0
        %586 = vmatmul.mubr.f32.gmra.mxu0 %v435
        %v587 = vpop.f32.mrf.mxu0
        %v588 = vadd.f32 %v382, %v587
        %v589 = vpop.f32.mrf.mxu0
        %v590 = vadd.f32 %v382, %v589
        %591 = vmatprep.mubr.f32.mxu0 0.0
        %592 = vmatmul.mubr.f32.gmra.mxu0 %v438
        %v593 = vpop.f32.mrf.mxu0
        %v594 = vadd.f32 %v387, %v593
        %v595 = vpop.f32.mrf.mxu0
        %v596 = vadd.f32 %v387, %v595
        %597 = vmatprep.mubr.f32.mxu0 0.0
        %598 = vmatmul.mubr.f32.gmra.mxu0 %v441
        %v599 = vpop.f32.mrf.mxu0
        %v600 = vadd.f32 %v392, %v599
        %v601 = vpop.f32.mrf.mxu0
        %v602 = vadd.f32 %v392, %v601
        %603 = vdwg.mxu0
        %v604 = vmul.f32 %v510, 0.5
        %v605 = vmul.f32 %v512, 0.5
        %v606 = vmul.f32 %v516, 0.5
        %v607 = vmul.f32 %v518, 0.5
        %v608 = vmul.f32 %v522, 0.5
        %v609 = vmul.f32 %v524, 0.5
        %v610 = vmul.f32 %v528, 0.5
        %v611 = vmul.f32 %v530, 0.5
        %v612 = vmul.f32 %v534, 0.5
        %v613 = vmul.f32 %v536, 0.5
        %v614 = vmul.f32 %v540, 0.5
        %v615 = vmul.f32 %v542, 0.5
        %v616 = vmul.f32 %v546, 0.5
        %v617 = vmul.f32 %v548, 0.5
        %v618 = vmul.f32 %v552, 0.5
        %v619 = vmul.f32 %v554, 0.5
        %v620 = vmul.f32 %v558, 0.5
        %v621 = vmul.f32 %v560, 0.5
        %v622 = vmul.f32 %v564, 0.5
        %v623 = vmul.f32 %v566, 0.5
        %v624 = vmul.f32 %v570, 0.5
        %v625 = vmul.f32 %v572, 0.5
        %v626 = vmul.f32 %v576, 0.5
        %v627 = vmul.f32 %v578, 0.5
        %v628 = vmul.f32 %v582, 0.5
        %v629 = vmul.f32 %v584, 0.5
        %v630 = vmul.f32 %v588, 0.5
        %v631 = vmul.f32 %v590, 0.5
        %v632 = vmul.f32 %v594, 0.5
        %v633 = vmul.f32 %v596, 0.5
        %v634 = vmul.f32 %v600, 0.5
        %v635 = vmul.f32 %v602, 0.5
        %v636 = vtanh.pop %v604
        %v637 = vtanh.pop %v605
        %v638 = vtanh.pop %v606
        %v639 = vtanh.pop %v607
        %v640 = vtanh.pop %v608
        %v641 = vtanh.pop %v609
        %v642 = vtanh.pop %v610
        %v643 = vtanh.pop %v611
        %v644 = vtanh.pop %v612
        %v645 = vtanh.pop %v613
        %v646 = vtanh.pop %v614
        %v647 = vtanh.pop %v615
        %v648 = vtanh.pop %v616
        %v649 = vtanh.pop %v617
        %v650 = vtanh.pop %v618
        %v651 = vtanh.pop %v619
        %v652 = vtanh.pop %v620
        %v653 = vtanh.pop %v621
        %v654 = vtanh.pop %v622
        %v655 = vtanh.pop %v623
        %v656 = vtanh.pop %v624
        %v657 = vtanh.pop %v625
        %v658 = vtanh.pop %v626
        %v659 = vtanh.pop %v627
        %v660 = vtanh.pop %v628
        %v661 = vtanh.pop %v629
        %v662 = vtanh.pop %v630
        %v663 = vtanh.pop %v631
        %v664 = vtanh.pop %v632
        %v665 = vtanh.pop %v633
        %v666 = vtanh.pop %v634
        %v667 = vtanh.pop %v635
        %v668 = vmul.f32 %v636, 0.5
        %v669 = vmul.f32 %v637, 0.5
        %v670 = vmul.f32 %v638, 0.5
        %v671 = vmul.f32 %v639, 0.5
        %v672 = vmul.f32 %v640, 0.5
        %v673 = vmul.f32 %v641, 0.5
        %v674 = vmul.f32 %v642, 0.5
        %v675 = vmul.f32 %v643, 0.5
        %v676 = vmul.f32 %v644, 0.5
        %v677 = vmul.f32 %v645, 0.5
        %v678 = vmul.f32 %v646, 0.5
        %v679 = vmul.f32 %v647, 0.5
        %v680 = vmul.f32 %v648, 0.5
        %v681 = vmul.f32 %v649, 0.5
        %v682 = vmul.f32 %v650, 0.5
        %v683 = vmul.f32 %v651, 0.5
        %v684 = vmul.f32 %v652, 0.5
        %v685 = vmul.f32 %v653, 0.5
        %v686 = vmul.f32 %v654, 0.5
        %v687 = vmul.f32 %v655, 0.5
        %v688 = vmul.f32 %v656, 0.5
        %v689 = vmul.f32 %v657, 0.5
        %v690 = vmul.f32 %v658, 0.5
        %v691 = vmul.f32 %v659, 0.5
        %v692 = vmul.f32 %v660, 0.5
        %v693 = vmul.f32 %v661, 0.5
        %v694 = vmul.f32 %v662, 0.5
        %v695 = vmul.f32 %v663, 0.5
        %v696 = vmul.f32 %v664, 0.5
        %v697 = vmul.f32 %v665, 0.5
        %v698 = vmul.f32 %v666, 0.5
        %v699 = vmul.f32 %v667, 0.5
        %v700 = vadd.f32 %v668, 0.5
        %v701 = vadd.f32 %v669, 0.5
        %v702 = vadd.f32 %v670, 0.5
        %v703 = vadd.f32 %v671, 0.5
        %v704 = vadd.f32 %v672, 0.5
        %v705 = vadd.f32 %v673, 0.5
        %v706 = vadd.f32 %v674, 0.5
        %v707 = vadd.f32 %v675, 0.5
        %v708 = vadd.f32 %v676, 0.5
        %v709 = vadd.f32 %v677, 0.5
        %v710 = vadd.f32 %v678, 0.5
        %v711 = vadd.f32 %v679, 0.5
        %v712 = vadd.f32 %v680, 0.5
        %v713 = vadd.f32 %v681, 0.5
        %v714 = vadd.f32 %v682, 0.5
        %v715 = vadd.f32 %v683, 0.5
        %v716 = vadd.f32 %v684, 0.5
        %v717 = vadd.f32 %v685, 0.5
        %v718 = vadd.f32 %v686, 0.5
        %v719 = vadd.f32 %v687, 0.5
        %v720 = vadd.f32 %v688, 0.5
        %v721 = vadd.f32 %v689, 0.5
        %v722 = vadd.f32 %v690, 0.5
        %v723 = vadd.f32 %v691, 0.5
        %v724 = vadd.f32 %v692, 0.5
        %v725 = vadd.f32 %v693, 0.5
        %v726 = vadd.f32 %v694, 0.5
        %v727 = vadd.f32 %v695, 0.5
        %v728 = vadd.f32 %v696, 0.5
        %v729 = vadd.f32 %v697, 0.5
        %v730 = vadd.f32 %v698, 0.5
        %v731 = vadd.f32 %v699, 0.5
        %v732 = vld [vmem:[%s3] sm:$0xff]
        %v733 = vld [vmem:[%s3 + $0x8] sm:$0xff]
        %v734 = vld [vmem:[%s3 + $0x10] sm:$0xff]
        %v735 = vld [vmem:[%s3 + $0x18] sm:$0xff]
        %v736 = vld [vmem:[%s3 + $0x20] sm:$0xff]
        %v737 = vld [vmem:[%s3 + $0x28] sm:$0xff]
        %v738 = vld [vmem:[%s3 + $0x30] sm:$0xff]
        %v739 = vld [vmem:[%s3 + $0x38] sm:$0xff]
        %v740 = vld [vmem:[%s4] sm:$0xff]
        %v741 = vld [vmem:[%s4 + $0x8] sm:$0xff]
        %v742 = vld [vmem:[%s4 + $0x10] sm:$0xff]
        %v743 = vld [vmem:[%s4 + $0x18] sm:$0xff]
        %v744 = vld [vmem:[%s4 + $0x20] sm:$0xff]
        %v745 = vld [vmem:[%s4 + $0x28] sm:$0xff]
        %v746 = vld [vmem:[%s4 + $0x30] sm:$0xff]
        %v747 = vld [vmem:[%s4 + $0x38] sm:$0xff]
        %749 = vset.pattern.permute.xlu0 0
        %750 = vperm.xlu0 %749, %v740
        %v751 = vpop.permute.xlu0 %750
        %754 = vset.pattern.permute.xlu0 0
        %755 = vperm.xlu0 %754, %v741
        %v756 = vpop.permute.xlu0 %755
        %759 = vset.pattern.permute.xlu0 0
        %760 = vperm.xlu0 %759, %v742
        %v761 = vpop.permute.xlu0 %760
        %764 = vset.pattern.permute.xlu0 0
        %765 = vperm.xlu0 %764, %v743
        %v766 = vpop.permute.xlu0 %765
        %769 = vset.pattern.permute.xlu0 0
        %770 = vperm.xlu0 %769, %v744
        %v771 = vpop.permute.xlu0 %770
        %774 = vset.pattern.permute.xlu0 0
        %775 = vperm.xlu0 %774, %v745
        %v776 = vpop.permute.xlu0 %775
        %779 = vset.pattern.permute.xlu0 0
        %780 = vperm.xlu0 %779, %v746
        %v781 = vpop.permute.xlu0 %780
        %784 = vset.pattern.permute.xlu0 0
        %785 = vperm.xlu0 %784, %v747
        %v786 = vpop.permute.xlu0 %785
        %788 = vmatprep.subr.mxu0 %v731
        %789 = vmatpush1.msra.mxu0 %v730
        %790 = vmatprep.subr.mxu0 %v729
        %791 = vmatpush1.msra.mxu0 %v728
        %792 = vmatprep.subr.mxu0 %v727
        %793 = vmatpush1.msra.mxu0 %v726
        %794 = vmatprep.subr.mxu0 %v725
        %795 = vmatpush1.msra.mxu0 %v724
        %796 = vmatprep.subr.mxu0 %v723
        %797 = vmatpush1.msra.mxu0 %v722
        %798 = vmatprep.subr.mxu0 %v721
        %799 = vmatpush1.msra.mxu0 %v720
        %800 = vmatprep.subr.mxu0 %v719
        %801 = vmatpush1.msra.mxu0 %v718
        %802 = vmatprep.subr.mxu0 %v717
        %803 = vmatpush1.msra.mxu0 %v716
        %804 = vmatprep.subr.mxu0 %v715
        %805 = vmatpush1.msra.mxu0 %v714
        %806 = vmatprep.subr.mxu0 %v713
        %807 = vmatpush1.msra.mxu0 %v712
        %808 = vmatprep.subr.mxu0 %v711
        %809 = vmatpush1.msra.mxu0 %v710
        %810 = vmatprep.subr.mxu0 %v709
        %811 = vmatpush1.msra.mxu0 %v708
        %812 = vmatprep.subr.mxu0 %v707
        %813 = vmatpush1.msra.mxu0 %v706
        %814 = vmatprep.subr.mxu0 %v705
        %815 = vmatpush1.msra.mxu0 %v704
        %816 = vmatprep.subr.mxu0 %v703
        %817 = vmatpush1.msra.mxu0 %v702
        %818 = vmatprep.subr.mxu0 %v701
        %819 = vmatpush1.msra.mxu0 %v700
        %820 = vmatprep.subr.mxu0 0.0
        %821 = vmatpush2.msra.mxu0 0.0
        %822 = vmatprep.subr.mxu0 0.0
        %823 = vmatpush2.msra.mxu0 0.0
        %824 = vmatprep.subr.mxu0 0.0
        %825 = vmatpush2.msra.mxu0 0.0
        %826 = vmatprep.subr.mxu0 0.0
        %827 = vmatpush2.msra.mxu0 0.0
        %828 = vmatprep.subr.mxu0 0.0
        %829 = vmatpush2.msra.mxu0 0.0
        %830 = vmatprep.subr.mxu0 0.0
        %831 = vmatpush2.msra.mxu0 0.0
        %832 = vmatprep.subr.mxu0 0.0
        %833 = vmatpush2.msra.mxu0 0.0
        %834 = vmatprep.subr.mxu0 0.0
        %835 = vmatpush2.msra.mxu0 0.0
        %836 = vmatprep.subr.mxu0 0.0
        %837 = vmatpush2.msra.mxu0 0.0
        %838 = vmatprep.subr.mxu0 0.0
        %839 = vmatpush2.msra.mxu0 0.0
        %840 = vmatprep.subr.mxu0 0.0
        %841 = vmatpush2.msra.mxu0 0.0
        %842 = vmatprep.subr.mxu0 0.0
        %843 = vmatpush2.msra.mxu0 0.0
        %844 = vmatprep.subr.mxu0 0.0
        %845 = vmatpush2.msra.mxu0 0.0
        %846 = vmatprep.subr.mxu0 0.0
        %847 = vmatpush2.msra.mxu0 0.0
        %848 = vmatprep.subr.mxu0 0.0
        %849 = vmatpush2.msra.mxu0 0.0
        %850 = vmatprep.subr.mxu0 0.0
        %851 = vmatpush2.msra.mxu0 0.0
        %852 = vmatprep.mubr.f32.mxu0 0.0
        %853 = vmatmul.mubr.f32.gmra.mxu0 %v732
        %v854 = vpop.f32.mrf.mxu0
        %v855 = vadd.f32 %v751, %v854
        %v856 = vpop.f32.mrf.mxu0
        %v857 = vadd.f32 %v751, %v856
        %858 = vmatprep.mubr.f32.mxu0 0.0
        %859 = vmatmul.mubr.f32.gmra.mxu0 %v733
        %v860 = vpop.f32.mrf.mxu0
        %v861 = vadd.f32 %v756, %v860
        %v862 = vpop.f32.mrf.mxu0
        %v863 = vadd.f32 %v756, %v862
        %864 = vmatprep.mubr.f32.mxu0 0.0
        %865 = vmatmul.mubr.f32.gmra.mxu0 %v734
        %v866 = vpop.f32.mrf.mxu0
        %v867 = vadd.f32 %v761, %v866
        %v868 = vpop.f32.mrf.mxu0
        %v869 = vadd.f32 %v761, %v868
        %870 = vmatprep.mubr.f32.mxu0 0.0
        %871 = vmatmul.mubr.f32.gmra.mxu0 %v735
        %v872 = vpop.f32.mrf.mxu0
        %v873 = vadd.f32 %v766, %v872
        %v874 = vpop.f32.mrf.mxu0
        %v875 = vadd.f32 %v766, %v874
        %876 = vmatprep.mubr.f32.mxu0 0.0
        %877 = vmatmul.mubr.f32.gmra.mxu0 %v736
        %v878 = vpop.f32.mrf.mxu0
        %v879 = vadd.f32 %v771, %v878
        %v880 = vpop.f32.mrf.mxu0
        %v881 = vadd.f32 %v771, %v880
        %882 = vmatprep.mubr.f32.mxu0 0.0
        %883 = vmatmul.mubr.f32.gmra.mxu0 %v737
        %v884 = vpop.f32.mrf.mxu0
        %v885 = vadd.f32 %v776, %v884
        %v886 = vpop.f32.mrf.mxu0
        %v887 = vadd.f32 %v776, %v886
        %888 = vmatprep.mubr.f32.mxu0 0.0
        %889 = vmatmul.mubr.f32.gmra.mxu0 %v738
        %v890 = vpop.f32.mrf.mxu0
        %v891 = vadd.f32 %v781, %v890
        %v892 = vpop.f32.mrf.mxu0
        %v893 = vadd.f32 %v781, %v892
        %894 = vmatprep.mubr.f32.mxu0 0.0
        %895 = vmatmul.mubr.f32.gmra.mxu0 %v739
        %v896 = vpop.f32.mrf.mxu0
        %v897 = vadd.f32 %v786, %v896
        %v898 = vpop.f32.mrf.mxu0
        %v899 = vadd.f32 %v786, %v898
        %900 = vdwg.mxu0
        %v901 = vmul.f32 %v855, 0.5
        %v902 = vmul.f32 %v857, 0.5
        %v903 = vmul.f32 %v861, 0.5
        %v904 = vmul.f32 %v863, 0.5
        %v905 = vmul.f32 %v867, 0.5
        %v906 = vmul.f32 %v869, 0.5
        %v907 = vmul.f32 %v873, 0.5
        %v908 = vmul.f32 %v875, 0.5
        %v909 = vmul.f32 %v879, 0.5
        %v910 = vmul.f32 %v881, 0.5
        %v911 = vmul.f32 %v885, 0.5
        %v912 = vmul.f32 %v887, 0.5
        %v913 = vmul.f32 %v891, 0.5
        %v914 = vmul.f32 %v893, 0.5
        %v915 = vmul.f32 %v897, 0.5
        %v916 = vmul.f32 %v899, 0.5
        %v917 = vtanh.pop %v901
        %v918 = vtanh.pop %v902
        %v919 = vtanh.pop %v903
        %v920 = vtanh.pop %v904
        %v921 = vtanh.pop %v905
        %v922 = vtanh.pop %v906
        %v923 = vtanh.pop %v907
        %v924 = vtanh.pop %v908
        %v925 = vtanh.pop %v909
        %v926 = vtanh.pop %v910
        %v927 = vtanh.pop %v911
        %v928 = vtanh.pop %v912
        %v929 = vtanh.pop %v913
        %v930 = vtanh.pop %v914
        %v931 = vtanh.pop %v915
        %v932 = vtanh.pop %v916
        %v933 = vmul.f32 %v917, 0.5
        %v934 = vmul.f32 %v918, 0.5
        %v935 = vmul.f32 %v919, 0.5
        %v936 = vmul.f32 %v920, 0.5
        %v937 = vmul.f32 %v921, 0.5
        %v938 = vmul.f32 %v922, 0.5
        %v939 = vmul.f32 %v923, 0.5
        %v940 = vmul.f32 %v924, 0.5
        %v941 = vmul.f32 %v925, 0.5
        %v942 = vmul.f32 %v926, 0.5
        %v943 = vmul.f32 %v927, 0.5
        %v944 = vmul.f32 %v928, 0.5
        %v945 = vmul.f32 %v929, 0.5
        %v946 = vmul.f32 %v930, 0.5
        %v947 = vmul.f32 %v931, 0.5
        %v948 = vmul.f32 %v932, 0.5
        %v949 = vadd.f32 %v933, 0.5
        %v950 = vadd.f32 %v934, 0.5
        %v951 = vadd.f32 %v935, 0.5
        %v952 = vadd.f32 %v936, 0.5
        %v953 = vadd.f32 %v937, 0.5
        %v954 = vadd.f32 %v938, 0.5
        %v955 = vadd.f32 %v939, 0.5
        %v956 = vadd.f32 %v940, 0.5
        %v957 = vadd.f32 %v941, 0.5
        %v958 = vadd.f32 %v942, 0.5
        %v959 = vadd.f32 %v943, 0.5
        %v960 = vadd.f32 %v944, 0.5
        %v961 = vadd.f32 %v945, 0.5
        %v962 = vadd.f32 %v946, 0.5
        %v963 = vadd.f32 %v947, 0.5
        %v964 = vadd.f32 %v948, 0.5
        %v965 = vld [vmem:[%s5] sm:$0xff]
        %v966 = vld [vmem:[%s6] sm:$0xff]
        %968 = vset.pattern.permute.xlu0 0
        %969 = vperm.xlu0 %968, %v966
        %v970 = vpop.permute.xlu0 %969
        %vm972 = vcmask 523264
        %v974 = vsel %vm972, %v965, 0
        %976 = vmatprep.subr.mxu0 0.0
        %977 = vmatpush1.msra.mxu0 0.0
        %978 = vmatprep.subr.mxu0 0.0
        %979 = vmatpush1.msra.mxu0 0.0
        %980 = vmatprep.subr.mxu0 0.0
        %981 = vmatpush1.msra.mxu0 0.0
        %982 = vmatprep.subr.mxu0 0.0
        %983 = vmatpush1.msra.mxu0 0.0
        %984 = vmatprep.subr.mxu0 0.0
        %985 = vmatpush1.msra.mxu0 0.0
        %986 = vmatprep.subr.mxu0 0.0
        %987 = vmatpush1.msra.mxu0 0.0
        %988 = vmatprep.subr.mxu0 0.0
        %989 = vmatpush1.msra.mxu0 0.0
        %990 = vmatprep.subr.mxu0 0.0
        %991 = vmatpush1.msra.mxu0 0.0
        %992 = vmatprep.subr.mxu0 %v964
        %993 = vmatpush1.msra.mxu0 %v963
        %994 = vmatprep.subr.mxu0 %v962
        %995 = vmatpush1.msra.mxu0 %v961
        %996 = vmatprep.subr.mxu0 %v960
        %997 = vmatpush1.msra.mxu0 %v959
        %998 = vmatprep.subr.mxu0 %v958
        %999 = vmatpush1.msra.mxu0 %v957
        %1000 = vmatprep.subr.mxu0 %v956
        %1001 = vmatpush1.msra.mxu0 %v955
        %1002 = vmatprep.subr.mxu0 %v954
        %1003 = vmatpush1.msra.mxu0 %v953
        %1004 = vmatprep.subr.mxu0 %v952
        %1005 = vmatpush1.msra.mxu0 %v951
        %1006 = vmatprep.subr.mxu0 %v950
        %1007 = vmatpush1.msra.mxu0 %v949
        %1008 = vmatprep.subr.mxu0 0.0
        %1009 = vmatpush2.msra.mxu0 0.0
        %1010 = vmatprep.subr.mxu0 0.0
        %1011 = vmatpush2.msra.mxu0 0.0
        %1012 = vmatprep.subr.mxu0 0.0
        %1013 = vmatpush2.msra.mxu0 0.0
        %1014 = vmatprep.subr.mxu0 0.0
        %1015 = vmatpush2.msra.mxu0 0.0
        %1016 = vmatprep.subr.mxu0 0.0
        %1017 = vmatpush2.msra.mxu0 0.0
        %1018 = vmatprep.subr.mxu0 0.0
        %1019 = vmatpush2.msra.mxu0 0.0
        %1020 = vmatprep.subr.mxu0 0.0
        %1021 = vmatpush2.msra.mxu0 0.0
        %1022 = vmatprep.subr.mxu0 0.0
        %1023 = vmatpush2.msra.mxu0 0.0
        %1024 = vmatprep.subr.mxu0 0.0
        %1025 = vmatpush2.msra.mxu0 0.0
        %1026 = vmatprep.subr.mxu0 0.0
        %1027 = vmatpush2.msra.mxu0 0.0
        %1028 = vmatprep.subr.mxu0 0.0
        %1029 = vmatpush2.msra.mxu0 0.0
        %1030 = vmatprep.subr.mxu0 0.0
        %1031 = vmatpush2.msra.mxu0 0.0
        %1032 = vmatprep.subr.mxu0 0.0
        %1033 = vmatpush2.msra.mxu0 0.0
        %1034 = vmatprep.subr.mxu0 0.0
        %1035 = vmatpush2.msra.mxu0 0.0
        %1036 = vmatprep.subr.mxu0 0.0
        %1037 = vmatpush2.msra.mxu0 0.0
        %1038 = vmatprep.subr.mxu0 0.0
        %1039 = vmatpush2.msra.mxu0 0.0
        %1040 = vmatprep.mubr.f32.mxu0 0.0
        %1041 = vmatmul.mubr.f32.gmra.mxu0 %v974
        %v1042 = vpop.f32.mrf.mxu0
        %v1043 = vadd.f32 %v970, %v1042
        %v1044 = vpop.f32.mrf.mxu0
        %v1045 = vadd.f32 %v970, %v1044
        %1046 = vdwg.mxu0
        %1047 = vst [vmem:[%s272] sm:$0xff] %v1043
        %1048 = vst [vmem:[%s272 + $0x8] sm:$0xff] %v1045
        %s1049 = sand.u32 %s181, 1
        %s1050 = scalar_lea.sflag [#allocation3], %s1049
        %s1051 = sand.u32 %s181, 1
        %s1052 = smul.addr %s1051, 16
        %s1053 = scalar_lea.vmem [#allocation2], %s1052
        // Predicated region
        $region49: #{tpu_custom_call.1} parent=47 // pred_check
          %p1054 = pneg %p191
        $region50: #{tpu_custom_call.1} parent=47 // pred_check_branch
          %1056 = sbr.rel (%p1054) target = $region52
        $region51: #{tpu_custom_call.1} parent=47 // pred_region
          %s1057 = smul.u32 2, %s21
          %s1059 = ssub.s32 256, 256
          %1060 = vsyncadd %s1050, %s1059
          %s1061 = smul.addr %s1057, 128
          %s1062 = scalar_lea.hbm %s7, %s1061
          %s1064 = sshll.u32 %s1053, 4
          %s1065 = int_to_ptr.vmem [resolvable:$true] %s1064
          %1067 = dma.vmem_to_hbm [thread:$0]  %s1065, 256, %s1062, %s1050
        $region52: #{tpu_custom_call.1} parent=47 // pred_fallthru
          _
      $region48: #{tpu_custom_call.1} parent=5 // pred_fallthru
        _
      %p1068 = scmp.le.s32.totalorder 2, %s16
      // Predicated region
      $region53: #{tpu_custom_call.1} parent=5 // pred_check
        %p1069 = pneg %p1068
      $region54: #{tpu_custom_call.1} parent=5 // pred_check_branch
        %1071 = sbr.rel (%p1069) target = $region56
      $region55: #{tpu_custom_call.1} parent=5 // pred_region
        %s1072 = ssub.s32 %s16, 2
        // Predicated region
        $region57: #{tpu_custom_call.1} parent=55 // pred_check
          %p1073 = pneg %p197
        $region58: #{tpu_custom_call.1} parent=55 // pred_check_branch
          %1075 = sbr.rel (%p1073) target = $region60
        $region59: #{tpu_custom_call.1} parent=55 // pred_region
          %s1076 = sand.u32 %s182, 1
          %s1077 = scalar_lea.sflag [#allocation3], %s1076
          %s1078 = sand.u32 %s182, 1
          %s1079 = smul.addr %s1078, 16
          %s1080 = scalar_lea.vmem [#allocation2], %s1079
          %1081 = dma.done %s1077, 256
        $region60: #{tpu_custom_call.1} parent=55 // pred_fallthru
          _
      $region56: #{tpu_custom_call.1} parent=5 // pred_fallthru
        _
    $region6: #{tpu_custom_call.1} parent=1 // loop_footer
      %s20 = sadd.s32 1, %s16
    $region7: #{tpu_custom_call.1} parent=1 // loop_footer_branch
      %15 = sbr.rel target = $region3
    $region8: #{tpu_custom_call.1} parent=1 // loop_exit
      _
    %1082 = vsyncpa [#allocation3], 1
    %s1083 = scalar_lea.sflag [#allocation3], 1
    %1084 = vsyncpa %s1083, 1

</llo_original>
